<compile_context>
chip_gen: v7x
topology: tpu7x:2x2x1
jax: 0.10.0
libtpu: 0.0.40
codegen_flags: <defaults>
</compile_context>

<pallas_src>
import functools
import math

import jax
import jax.numpy as jnp
from jax.experimental import pallas as pl
from jax.experimental.pallas import tpu as pltpu

LEAKY_SLOPE = 0.01  # F.leaky_relu default negative slope


def _round_up(x, m):
    return ((x + m - 1) // m) * m


def node_project_kernel(h_ref, w_ref, z_ref):
    """z = h @ W1_h for one tile of nodes.  h:[TN,in_feat]  w:[in_feat,inter_pad]."""
    z_ref[...] = jnp.dot(h_ref[...], w_ref[...],
                         preferred_element_type=jnp.float32).astype(z_ref.dtype)


def qconv_tail_kernel(msg_ref, h_ref, w2h_ref, w2n_ref, b2_ref, o_ref, *,
                      num_nbrs, inter_pad):
    """leaky_relu -> neighbor mean -> linear2 -> relu for one tile of nodes.

    msg_ref : [TN, K*inter_pad]  pre-activation messages (z[src] + edge_w @ W1_e),
                                 K contiguous 128-lane-aligned blocks of width inter_pad
    h_ref   : [TN, in_feat]
    w2h_ref : [in_feat, out_pad]
    w2n_ref : [inter_pad, out_pad]
    b2_ref  : [1, out_pad]
    o_ref   : [TN, out_pad]
    """
    tn = msg_ref.shape[0]
    acc = jnp.zeros((tn, inter_pad), dtype=jnp.float32)
    # Static unroll over the small fixed neighbor count: each slice is a 128-lane-aligned
    # block, so this is pure VPU work (no relayout, no tiny per-k matmuls).
    for k in range(num_nbrs):
        t = msg_ref[:, k * inter_pad:(k + 1) * inter_pad].astype(jnp.float32)
        acc = acc + jnp.where(t > 0, t, LEAKY_SLOPE * t)
    h_n = acc * (1.0 / num_nbrs)

    # Split second linear:  [h | h_N] @ W2  ==  h @ W2_h + h_N @ W2_N   (no lane concat).
    out = jnp.dot(h_ref[...], w2h_ref[...], preferred_element_type=jnp.float32)
    out = out + jnp.dot(h_n.astype(w2n_ref.dtype), w2n_ref[...],
                        preferred_element_type=jnp.float32)
    out = out + b2_ref[...].astype(jnp.float32)
    o_ref[...] = jnp.maximum(out, 0.0).astype(o_ref.dtype)


def qconv_forward(h, nbr_idx, edge_w, w1_t, w2_t, b2, *, tile_n=128,
                  compute_dtype=jnp.float32):
    """QConv forward.

    h       : [N, in_feat]              node features (f32)
    nbr_idx : [N, K] int32              padded fixed-degree neighbor (source) list
    edge_w  : [N, K, 3]                 edge features aligned with nbr_idx
    w1_t    : [in_feat+3, inter]        linear1 weight, transposed (no bias)
    w2_t    : [in_feat+inter, out_feat] linear2 weight, transposed
    b2      : [out_feat]                linear2 bias
    """
    N, in_feat = h.shape
    K = nbr_idx.shape[1]
    edge_dim = edge_w.shape[-1]
    inter = w1_t.shape[1]
    out_feat = w2_t.shape[1]
    assert tile_n % 8 == 0, "tile_n must be a multiple of the 8-row sublane tile"

    dt = compute_dtype
    itemsize = jnp.dtype(dt).itemsize
    hp = jax.lax.Precision.HIGHEST

    # Lane-pad matmul output dims to 128 (zero rows/cols contribute nothing, sliced off at
    # the end); pad N to a whole number of node tiles so no remainder tile is dropped.
    inter_pad = _round_up(inter, 128)
    out_pad = _round_up(out_feat, 128)
    n_pad = _round_up(N, tile_n)
    n_tiles = pl.cdiv(n_pad, tile_n)

    # Split + zero-pad the weights so no concat is ever needed.
    w1_h = jnp.zeros((in_feat, inter_pad), dt).at[:, :inter].set(w1_t[:in_feat].astype(dt))
    w1_e = jnp.zeros((edge_dim, inter_pad), jnp.float32).at[:, :inter].set(
        w1_t[in_feat:].astype(jnp.float32))
    w2_h = jnp.zeros((in_feat, out_pad), dt).at[:, :out_feat].set(w2_t[:in_feat].astype(dt))
    w2_n = jnp.zeros((inter_pad, out_pad), dt).at[:inter, :out_feat].set(
        w2_t[in_feat:].astype(dt))
    b2_p = jnp.zeros((1, out_pad), jnp.float32).at[0, :out_feat].set(b2.astype(jnp.float32))

    h_pad = jnp.zeros((n_pad, in_feat), dt).at[:N].set(h.astype(dt))

    # ---- Pallas call 1: per-node projection z = h @ W1_h (once per node, not per edge).
    z = pl.pallas_call(
        node_project_kernel,
        out_shape=jax.ShapeDtypeStruct((n_pad, inter_pad), jnp.float32),
        grid_spec=pltpu.PrefetchScalarGridSpec(
            num_scalar_prefetch=0,
            grid=(n_tiles,),
            in_specs=[
                pl.BlockSpec((tile_n, in_feat), lambda i: (i, 0)),
                pl.BlockSpec((in_feat, inter_pad), lambda i: (0, 0)),
            ],
            out_specs=pl.BlockSpec((tile_n, inter_pad), lambda i: (i, 0)),
        ),
        compiler_params=pltpu.CompilerParams(
            dimension_semantics=("parallel",)),
        cost_estimate=pl.CostEstimate(
            flops=2 * n_pad * in_feat * inter_pad,
            transcendentals=0,
            bytes_accessed=(n_pad * in_feat + in_feat * inter_pad) * itemsize
                           + n_pad * inter_pad * 4),
    )(h_pad, w1_h)

    # ---- Glue (plain JAX; XLA fuses with the data-dependent gather): pre-activation
    #      messages msg[n,k] = z[nbr_idx[n,k]] + edge_w[n,k] @ W1_e, laid out as K
    #      lane-aligned blocks. The [h_src | edge_w] concat is never materialized in HBM.
    e_contrib = jnp.einsum("nke,ed->nkd", edge_w.astype(jnp.float32), w1_e, precision=hp)
    msg = (z[nbr_idx] + e_contrib).reshape(N, K * inter_pad).astype(dt)
    msg_pad = jnp.zeros((n_pad, K * inter_pad), dt).at[:N].set(msg)

    # ---- Pallas call 2: leaky_relu + neighbor mean + split-W2 linear2 + relu, node tiles.
    kernel = functools.partial(qconv_tail_kernel, num_nbrs=K, inter_pad=inter_pad)
    out = pl.pallas_call(
        kernel,
        out_shape=jax.ShapeDtypeStruct((n_pad, out_pad), jnp.float32),
        grid_spec=pltpu.PrefetchScalarGridSpec(
            num_scalar_prefetch=0,
            grid=(n_tiles,),
            in_specs=[
                pl.BlockSpec((tile_n, K * inter_pad), lambda i: (i, 0)),
                pl.BlockSpec((tile_n, in_feat), lambda i: (i, 0)),
                pl.BlockSpec((in_feat, out_pad), lambda i: (0, 0)),
                pl.BlockSpec((inter_pad, out_pad), lambda i: (0, 0)),
                pl.BlockSpec((1, out_pad), lambda i: (0, 0)),
            ],
            out_specs=pl.BlockSpec((tile_n, out_pad), lambda i: (i, 0)),
        ),
        compiler_params=pltpu.CompilerParams(
            dimension_semantics=("parallel",),       # shards node tiles across v7x's 2 TCs
            vmem_limit_bytes=48 * 1024 * 1024),      # headroom for larger tile_n sweeps
        cost_estimate=pl.CostEstimate(
            flops=2 * n_pad * (in_feat + inter_pad) * out_pad + 2 * n_pad * K * inter_pad,
            transcendentals=0,
            bytes_accessed=(n_pad * (K * inter_pad + in_feat)
                            + (in_feat + inter_pad) * out_pad) * itemsize
                           + (out_pad + n_pad * out_pad) * 4),
    )(msg_pad, h_pad, w2_h, w2_n, b2_p)

    return out[:N, :out_feat]


def _xavier_normal(key, fan_out, fan_in, gain):
    # matches nn.init.xavier_normal_ on a torch [fan_out, fan_in] weight
    std = gain * math.sqrt(2.0 / (fan_in + fan_out))
    return std * jax.random.normal(key, (fan_out, fan_in), dtype=jnp.float32)


if __name__ == "__main__":
    # Small synthetic shapes consistent with the module's __init__.
    N = 16          # nodes
    K = 4           # fixed in-degree (padded neighbor list)
    in_feat = 16
    inter_dim = 32
    out_feat = 32
    edge_dim = 3    # module hard-codes edge feature width of 3

    key = jax.random.PRNGKey(0)
    k_h, k_e, k_n, k_w1, k_w2, k_b2 = jax.random.split(key, 6)

    h = jax.random.normal(k_h, (N, in_feat), dtype=jnp.float32)
    edge_w = jax.random.normal(k_e, (N, K, edge_dim), dtype=jnp.float32)
    nbr_idx = jax.random.randint(k_n, (N, K), 0, N)

    # Deterministic parameter init (xavier_normal with relu gain, like reset_parameters).
    gain = math.sqrt(2.0)  # calculate_gain('relu')
    w1 = _xavier_normal(k_w1, inter_dim, in_feat + edge_dim, gain)   # torch [inter, in+3]
    w2 = _xavier_normal(k_w2, out_feat, in_feat + inter_dim, gain)   # torch [out, in+inter]
    bound = 1.0 / math.sqrt(in_feat + inter_dim)
    b2 = jax.random.uniform(k_b2, (out_feat,), jnp.float32, -bound, bound)

    w1_t = w1.T  # [in_feat+3, inter]
    w2_t = w2.T  # [in_feat+inter, out]

    fwd = jax.jit(qconv_forward, static_argnames=("tile_n", "compute_dtype"))

    # f32 path (matches the PyTorch module's precision).
    out = fwd(h, nbr_idx, edge_w, w1_t, w2_t, b2, tile_n=128)
    out = jax.block_until_ready(out)

    # Pure-JAX reference (full f32 precision).
    hp = jax.lax.Precision.HIGHEST
    m_ref = jnp.concatenate([h[nbr_idx], edge_w], axis=-1)            # [N, K, in+3]
    tmp = jnp.einsum("nkf,fd->nkd", m_ref, w1_t, precision=hp)
    tmp = jnp.where(tmp > 0, tmp, LEAKY_SLOPE * tmp)
    h_N = jnp.mean(tmp, axis=1)
    ref = jnp.maximum(
        jnp.dot(jnp.concatenate([h, h_N], axis=1), w2_t, precision=hp) + b2, 0.0)
    assert jnp.allclose(out, ref, atol=1e-4, rtol=1e-4), "f32 mismatch vs reference"

    # bf16-operand path (f32 accumulation) — bandwidth/MXU headroom on v6e/v7x.
    out_bf16 = fwd(h, nbr_idx, edge_w, w1_t, w2_t, b2, tile_n=128,
                   compute_dtype=jnp.bfloat16)
    out_bf16 = jax.block_until_ready(out_bf16)
    assert jnp.allclose(out_bf16, ref, atol=1e-1, rtol=1e-1), "bf16 mismatch vs reference"

    print("KERNEL_OK")
</pallas_src>

<mosaic_0001>
module attributes {stable_mosaic.version = 11 : i64} {
  func.func @node_project_kernel(%arg0: i32, %arg1: memref<128x16xf32, #tpu.memory_space<vmem>>, %arg2: memref<16x128xf32, #tpu.memory_space<vmem>>, %arg3: memref<128x128xf32, #tpu.memory_space<vmem>>) attributes {dimension_semantics = [#tpu.dimension_semantics<parallel>], iteration_bounds = array<i64: 1>, scalar_prefetch = 0 : i64, scratch_operands = 0 : i64, tpu.core_type = #tpu.core_type<tc>, window_params = [{transform_indices = @transform_0, window_bounds = array<i64: 128, 16>}, {pipeline_mode = #tpu.pipeline_mode<synchronous>, transform_indices = @transform_1, window_bounds = array<i64: 16, 128>}, {transform_indices = @transform_2, window_bounds = array<i64: 128, 128>}]} {
    %c0 = arith.constant 0 : index
    %c0_0 = arith.constant 0 : index
    %0 = vector.load %arg1[%c0, %c0_0] : memref<128x16xf32, #tpu.memory_space<vmem>>, vector<128x16xf32>
    %c0_1 = arith.constant 0 : index
    %c0_2 = arith.constant 0 : index
    %1 = vector.load %arg2[%c0_1, %c0_2] : memref<16x128xf32, #tpu.memory_space<vmem>>, vector<16x128xf32>
    %cst = arith.constant dense<0.000000e+00> : vector<128x128xf32>
    %2 = tpu.matmul %0, %1, %cst {dimension_numbers = #tpu.dot_dimension_numbers<[1], [0], [0], [1], [0, 0, 1, 1], [], []>} : vector<128x16xf32>, vector<16x128xf32>, vector<128x128xf32> -> vector<128x128xf32>
    %c0_3 = arith.constant 0 : index
    %c0_4 = arith.constant 0 : index
    %3 = vector.load %arg3[%c0_3, %c0_4] : memref<128x128xf32, #tpu.memory_space<vmem>>, vector<128x128xf32>
    tpu.vector_store %arg3[%c0_3, %c0_4], %2 {strides = array<i32>} : memref<128x128xf32, #tpu.memory_space<vmem>>, vector<128x128xf32>,
    return
  }
  func.func @transform_0(%arg0: i32) -> (i32, i32) {
    %c0_i32 = arith.constant 0 : i32
    %c0_i32_0 = arith.constant 0 : i32
    return %arg0, %c0_i32 : i32, i32
  }
  func.func @transform_1(%arg0: i32) -> (i32, i32) {
    %c0_i32 = arith.constant 0 : i32
    %c0_i32_0 = arith.constant 0 : i32
    %c0_i32_1 = arith.constant 0 : i32
    return %c0_i32, %c0_i32_0 : i32, i32
  }
  func.func @transform_2(%arg0: i32) -> (i32, i32) {
    %c0_i32 = arith.constant 0 : i32
    %c0_i32_0 = arith.constant 0 : i32
    return %arg0, %c0_i32 : i32, i32
  }
}

module attributes {stable_mosaic.version = 11 : i64} {
  func.func @qconv_tail_kernel(%arg0: i32, %arg1: memref<128x512xf32, #tpu.memory_space<vmem>>, %arg2: memref<128x16xf32, #tpu.memory_space<vmem>>, %arg3: memref<16x128xf32, #tpu.memory_space<vmem>>, %arg4: memref<128x128xf32, #tpu.memory_space<vmem>>, %arg5: memref<1x128xf32, #tpu.memory_space<vmem>>, %arg6: memref<128x128xf32, #tpu.memory_space<vmem>>) attributes {dimension_semantics = [#tpu.dimension_semantics<parallel>], iteration_bounds = array<i64: 1>, scalar_prefetch = 0 : i64, scratch_operands = 0 : i64, tpu.core_type = #tpu.core_type<tc>, window_params = [{transform_indices = @transform_0, window_bounds = array<i64: 128, 512>}, {transform_indices = @transform_1, window_bounds = array<i64: 128, 16>}, {pipeline_mode = #tpu.pipeline_mode<synchronous>, transform_indices = @transform_2, window_bounds = array<i64: 16, 128>}, {pipeline_mode = #tpu.pipeline_mode<synchronous>, transform_indices = @transform_3, window_bounds = array<i64: 128, 128>}, {pipeline_mode = #tpu.pipeline_mode<synchronous>, transform_indices = @transform_4, window_bounds = array<i64: 1, 128>}, {transform_indices = @transform_5, window_bounds = array<i64: 128, 128>}]} {
    %cst = arith.constant 0.000000e+00 : f32
    %0 = vector.broadcast %cst : f32 to vector<128x128xf32>
    %c0 = arith.constant 0 : index
    %c0_0 = arith.constant 0 : index
    %1 = vector.load %arg1[%c0, %c0_0] : memref<128x512xf32, #tpu.memory_space<vmem>>, vector<128x128xf32>
    %cst_1 = arith.constant 0.000000e+00 : f32
    %2 = vector.broadcast %cst_1 : f32 to vector<128x128xf32>
    %3 = arith.cmpf ogt, %1, %2 : vector<128x128xf32>
    %cst_2 = arith.constant 0.00999999977 : f32
    %4 = vector.broadcast %cst_2 : f32 to vector<128x128xf32>
    %5 = arith.mulf %4, %1 : vector<128x128xf32>
    %6 = arith.select %3, %1, %5 : vector<128x128xi1>, vector<128x128xf32>
    %7 = arith.addf %0, %6 : vector<128x128xf32>
    %c0_3 = arith.constant 0 : index
    %c128 = arith.constant 128 : index
    %8 = vector.load %arg1[%c0_3, %c128] : memref<128x512xf32, #tpu.memory_space<vmem>>, vector<128x128xf32>
    %cst_4 = arith.constant 0.000000e+00 : f32
    %9 = vector.broadcast %cst_4 : f32 to vector<128x128xf32>
    %10 = arith.cmpf ogt, %8, %9 : vector<128x128xf32>
    %cst_5 = arith.constant 0.00999999977 : f32
    %11 = vector.broadcast %cst_5 : f32 to vector<128x128xf32>
    %12 = arith.mulf %11, %8 : vector<128x128xf32>
    %13 = arith.select %10, %8, %12 : vector<128x128xi1>, vector<128x128xf32>
    %14 = arith.addf %7, %13 : vector<128x128xf32>
    %c0_6 = arith.constant 0 : index
    %c256 = arith.constant 256 : index
    %15 = vector.load %arg1[%c0_6, %c256] : memref<128x512xf32, #tpu.memory_space<vmem>>, vector<128x128xf32>
    %cst_7 = arith.constant 0.000000e+00 : f32
    %16 = vector.broadcast %cst_7 : f32 to vector<128x128xf32>
    %17 = arith.cmpf ogt, %15, %16 : vector<128x128xf32>
    %cst_8 = arith.constant 0.00999999977 : f32
    %18 = vector.broadcast %cst_8 : f32 to vector<128x128xf32>
    %19 = arith.mulf %18, %15 : vector<128x128xf32>
    %20 = arith.select %17, %15, %19 : vector<128x128xi1>, vector<128x128xf32>
    %21 = arith.addf %14, %20 : vector<128x128xf32>
    %c0_9 = arith.constant 0 : index
    %c384 = arith.constant 384 : index
    %22 = vector.load %arg1[%c0_9, %c384] : memref<128x512xf32, #tpu.memory_space<vmem>>, vector<128x128xf32>
    %cst_10 = arith.constant 0.000000e+00 : f32
    %23 = vector.broadcast %cst_10 : f32 to vector<128x128xf32>
    %24 = arith.cmpf ogt, %22, %23 : vector<128x128xf32>
    %cst_11 = arith.constant 0.00999999977 : f32
    %25 = vector.broadcast %cst_11 : f32 to vector<128x128xf32>
    %26 = arith.mulf %25, %22 : vector<128x128xf32>
    %27 = arith.select %24, %22, %26 : vector<128x128xi1>, vector<128x128xf32>
    %28 = arith.addf %21, %27 : vector<128x128xf32>
    %cst_12 = arith.constant 2.500000e-01 : f32
    %29 = vector.broadcast %cst_12 : f32 to vector<128x128xf32>
    %30 = arith.mulf %28, %29 : vector<128x128xf32>
    %c0_13 = arith.constant 0 : index
    %c0_14 = arith.constant 0 : index
    %31 = vector.load %arg2[%c0_13, %c0_14] : memref<128x16xf32, #tpu.memory_space<vmem>>, vector<128x16xf32>
    %c0_15 = arith.constant 0 : index
    %c0_16 = arith.constant 0 : index
    %32 = vector.load %arg3[%c0_15, %c0_16] : memref<16x128xf32, #tpu.memory_space<vmem>>, vector<16x128xf32>
    %cst_17 = arith.constant dense<0.000000e+00> : vector<128x128xf32>
    %33 = tpu.matmul %31, %32, %cst_17 {dimension_numbers = #tpu.dot_dimension_numbers<[1], [0], [0], [1], [0, 0, 1, 1], [], []>} : vector<128x16xf32>, vector<16x128xf32>, vector<128x128xf32> -> vector<128x128xf32>
    %c0_18 = arith.constant 0 : index
    %c0_19 = arith.constant 0 : index
    %34 = vector.load %arg4[%c0_18, %c0_19] : memref<128x128xf32, #tpu.memory_space<vmem>>, vector<128x128xf32>
    %cst_20 = arith.constant dense<0.000000e+00> : vector<128x128xf32>
    %35 = tpu.matmul %30, %34, %cst_20 {dimension_numbers = #tpu.dot_dimension_numbers<[1], [0], [0], [1], [0, 0, 1, 1], [], []>} : vector<128x128xf32>, vector<128x128xf32>, vector<128x128xf32> -> vector<128x128xf32>
    %36 = arith.addf %33, %35 : vector<128x128xf32>
    %c0_21 = arith.constant 0 : index
    %c0_22 = arith.constant 0 : index
    %37 = vector.load %arg5[%c0_21, %c0_22] : memref<1x128xf32, #tpu.memory_space<vmem>>, vector<1x128xf32>
    %38 = vector.broadcast %37 : vector<1x128xf32> to vector<128x128xf32>
    %39 = arith.addf %36, %38 : vector<128x128xf32>
    %cst_23 = arith.constant 0.000000e+00 : f32
    %40 = vector.broadcast %cst_23 : f32 to vector<128x128xf32>
    %41 = arith.maximumf %39, %40 : vector<128x128xf32>
    %c0_24 = arith.constant 0 : index
    %c0_25 = arith.constant 0 : index
    %42 = vector.load %arg6[%c0_24, %c0_25] : memref<128x128xf32, #tpu.memory_space<vmem>>, vector<128x128xf32>
    tpu.vector_store %arg6[%c0_24, %c0_25], %41 {strides = array<i32>} : memref<128x128xf32, #tpu.memory_space<vmem>>, vector<128x128xf32>,
    return
  }
  func.func @transform_0(%arg0: i32) -> (i32, i32) {
    %c0_i32 = arith.constant 0 : i32
    %c0_i32_0 = arith.constant 0 : i32
    return %arg0, %c0_i32 : i32, i32
  }
  func.func @transform_1(%arg0: i32) -> (i32, i32) {
    %c0_i32 = arith.constant 0 : i32
    %c0_i32_0 = arith.constant 0 : i32
    return %arg0, %c0_i32 : i32, i32
  }
  func.func @transform_2(%arg0: i32) -> (i32, i32) {
    %c0_i32 = arith.constant 0 : i32
    %c0_i32_0 = arith.constant 0 : i32
    %c0_i32_1 = arith.constant 0 : i32
    return %c0_i32, %c0_i32_0 : i32, i32
  }
  func.func @transform_3(%arg0: i32) -> (i32, i32) {
    %c0_i32 = arith.constant 0 : i32
    %c0_i32_0 = arith.constant 0 : i32
    %c0_i32_1 = arith.constant 0 : i32
    return %c0_i32, %c0_i32_0 : i32, i32
  }
  func.func @transform_4(%arg0: i32) -> (i32, i32) {
    %c0_i32 = arith.constant 0 : i32
    %c0_i32_0 = arith.constant 0 : i32
    %c0_i32_1 = arith.constant 0 : i32
    return %c0_i32, %c0_i32_0 : i32, i32
  }
  func.func @transform_5(%arg0: i32) -> (i32, i32) {
    %c0_i32 = arith.constant 0 : i32
    %c0_i32_0 = arith.constant 0 : i32
    return %arg0, %c0_i32 : i32, i32
  }
}

</mosaic_0001>

<llo_original>
// kernel: qconv_forward.2
$region0: #{qconv_forward.2}
  #allocation0 [shape = 'u32[]', space=smem, size = 0x4, offset = 0x4, fixed_abs, tag = 'smem constant byte address 0x4 - core index']
  #allocation1 [shape = 'u32[144,128]{1,0:T(1,128)}', space=vmem, size = 0x12000, scoped, tag = 'internal scratch']
  %s0 = inlined_call_operand.vmem [shape: f32[128,16], index: 0, kind: input, shape index: {}]
  %s1 = inlined_call_operand.vmem [shape: f32[16,128], index: 1, kind: input, shape index: {}]
  %s2 = inlined_call_operand.vmem [shape: f32[128,128], index: 2, kind: output, shape index: {}]
  %s3 = sld [smem:[#allocation0]]
  $region18: #{qconv_forward.2} parent=0
    _
  %s5 = ssub.s32 1, %s3
  %s6 = scalar_select 0, %s5, %s3
  // Predicated region
  $region2: #{qconv_forward.2} parent=0 // pred_check
    _
  $region3: #{qconv_forward.2} parent=0 // pred_check_branch
    %8 = sbr.rel (0) target = $region5
  $region4: #{qconv_forward.2} parent=0 // pred_region
    _
  $region5: #{qconv_forward.2} parent=0 // pred_fallthru
    _
  // Predicated region
  $region6: #{qconv_forward.2} parent=0 // pred_check
    _
  $region7: #{qconv_forward.2} parent=0 // pred_check_branch
    %10 = sbr.rel (0) target = $region9
  $region8: #{qconv_forward.2} parent=0 // pred_region
    _
  $region9: #{qconv_forward.2} parent=0 // pred_fallthru
    _
  %v11 = vld [vmem:[%s0] sm:$0xff]
  %v12 = vld [vmem:[%s0 + $0x8] sm:$0xff]
  %v13 = vld [vmem:[%s0 + $0x10] sm:$0xff]
  %v14 = vld [vmem:[%s0 + $0x18] sm:$0xff]
  %v15 = vld [vmem:[%s0 + $0x20] sm:$0xff]
  %v16 = vld [vmem:[%s0 + $0x28] sm:$0xff]
  %v17 = vld [vmem:[%s0 + $0x30] sm:$0xff]
  %v18 = vld [vmem:[%s0 + $0x38] sm:$0xff]
  %v19 = vld [vmem:[%s0 + $0x40] sm:$0xff]
  %v20 = vld [vmem:[%s0 + $0x48] sm:$0xff]
  %v21 = vld [vmem:[%s0 + $0x50] sm:$0xff]
  %v22 = vld [vmem:[%s0 + $0x58] sm:$0xff]
  %v23 = vld [vmem:[%s0 + $0x60] sm:$0xff]
  %v24 = vld [vmem:[%s0 + $0x68] sm:$0xff]
  %v25 = vld [vmem:[%s0 + $0x70] sm:$0xff]
  %v26 = vld [vmem:[%s0 + $0x78] sm:$0xff]
  %v27 = vld [vmem:[%s1] sm:$0xff]
  %v28 = vld [vmem:[%s1 + $0x8] sm:$0xff]
  %vm29 = vcmask 130048
  %v31 = vsel %vm29, %v11, 0
  %v34 = vsel %vm29, %v12, 0
  %v37 = vsel %vm29, %v13, 0
  %v40 = vsel %vm29, %v14, 0
  %v43 = vsel %vm29, %v15, 0
  %v46 = vsel %vm29, %v16, 0
  %v49 = vsel %vm29, %v17, 0
  %v52 = vsel %vm29, %v18, 0
  %v55 = vsel %vm29, %v19, 0
  %v58 = vsel %vm29, %v20, 0
  %v61 = vsel %vm29, %v21, 0
  %v64 = vsel %vm29, %v22, 0
  %v67 = vsel %vm29, %v23, 0
  %v70 = vsel %vm29, %v24, 0
  %v73 = vsel %vm29, %v25, 0
  %v76 = vsel %vm29, %v26, 0
  %78 = vmatprep.subr.mxu0 0.0
  %79 = vmatpush1.msra.mxu0 %v27
  %80 = vmatprep.subr.mxu0 0.0
  %81 = vmatpush1.msra.mxu0 %v28
  %82 = vmatprep.subr.mxu0 0.0
  %83 = vmatpush1.msra.mxu0 0.0
  %84 = vmatprep.subr.mxu0 0.0
  %85 = vmatpush1.msra.mxu0 0.0
  %86 = vmatprep.subr.mxu0 0.0
  %87 = vmatpush1.msra.mxu0 0.0
  %88 = vmatprep.subr.mxu0 0.0
  %89 = vmatpush1.msra.mxu0 0.0
  %90 = vmatprep.subr.mxu0 0.0
  %91 = vmatpush1.msra.mxu0 0.0
  %92 = vmatprep.subr.mxu0 0.0
  %93 = vmatpush1.msra.mxu0 0.0
  %94 = vmatprep.subr.mxu0 0.0
  %95 = vmatpush1.msra.mxu0 0.0
  %96 = vmatprep.subr.mxu0 0.0
  %97 = vmatpush1.msra.mxu0 0.0
  %98 = vmatprep.subr.mxu0 0.0
  %99 = vmatpush1.msra.mxu0 0.0
  %100 = vmatprep.subr.mxu0 0.0
  %101 = vmatpush1.msra.mxu0 0.0
  %102 = vmatprep.subr.mxu0 0.0
  %103 = vmatpush1.msra.mxu0 0.0
  %104 = vmatprep.subr.mxu0 0.0
  %105 = vmatpush1.msra.mxu0 0.0
  %106 = vmatprep.subr.mxu0 0.0
  %107 = vmatpush1.msra.mxu0 0.0
  %108 = vmatprep.subr.mxu0 0.0
  %109 = vmatpush1.msra.mxu0 0.0
  %110 = vmatprep.subr.mxu0 0.0
  %111 = vmatpush1.msra.mxu0 0.0
  %112 = vmatprep.subr.mxu0 0.0
  %113 = vmatpush1.msra.mxu0 0.0
  %114 = vmatprep.subr.mxu0 0.0
  %115 = vmatpush1.msra.mxu0 0.0
  %116 = vmatprep.subr.mxu0 0.0
  %117 = vmatpush1.msra.mxu0 0.0
  %118 = vmatprep.subr.mxu0 0.0
  %119 = vmatpush1.msra.mxu0 0.0
  %120 = vmatprep.subr.mxu0 0.0
  %121 = vmatpush1.msra.mxu0 0.0
  %122 = vmatprep.subr.mxu0 0.0
  %123 = vmatpush1.msra.mxu0 0.0
  %124 = vmatprep.subr.mxu0 0.0
  %125 = vmatpush1.msra.mxu0 0.0
  %126 = vmatprep.subr.mxu0 0.0
  %127 = vmatpush1.msra.mxu0 0.0
  %128 = vmatprep.subr.mxu0 0.0
  %129 = vmatpush1.msra.mxu0 0.0
  %130 = vmatprep.subr.mxu0 0.0
  %131 = vmatpush1.msra.mxu0 0.0
  %132 = vmatprep.subr.mxu0 0.0
  %133 = vmatpush1.msra.mxu0 0.0
  %134 = vmatprep.subr.mxu0 0.0
  %135 = vmatpush1.msra.mxu0 0.0
  %136 = vmatprep.subr.mxu0 0.0
  %137 = vmatpush1.msra.mxu0 0.0
  %138 = vmatprep.subr.mxu0 0.0
  %139 = vmatpush1.msra.mxu0 0.0
  %140 = vmatprep.subr.mxu0 0.0
  %141 = vmatpush1.msra.mxu0 0.0
  %142 = vmatprep.mubr.f32.mxu0 0.0
  %143 = vmatmul.mubr.f32.gmra.mrb[0].mxu0 %v31
  %v144 = vpop.f32.mrb[0].mxu0
  %v145 = vadd.f32 0.0, %v144
  %v146 = vpop.f32.mrb[0].mxu0
  %147 = vmatprep.mubr.f32.mxu0 0.0
  %148 = vmatmul.mubr.f32.gmra.mrb[0].mxu0 %v34
  %v149 = vpop.f32.mrb[0].mxu0
  %v150 = vadd.f32 0.0, %v149
  %v151 = vpop.f32.mrb[0].mxu0
  %152 = vmatprep.mubr.f32.mxu0 0.0
  %153 = vmatmul.mubr.f32.gmra.mrb[0].mxu0 %v37
  %v154 = vpop.f32.mrb[0].mxu0
  %v155 = vadd.f32 0.0, %v154
  %v156 = vpop.f32.mrb[0].mxu0
  %157 = vmatprep.mubr.f32.mxu0 0.0
  %158 = vmatmul.mubr.f32.gmra.mrb[0].mxu0 %v40
  %v159 = vpop.f32.mrb[0].mxu0
  %v160 = vadd.f32 0.0, %v159
  %v161 = vpop.f32.mrb[0].mxu0
  %162 = vmatprep.mubr.f32.mxu0 0.0
  %163 = vmatmul.mubr.f32.gmra.mrb[0].mxu0 %v43
  %v164 = vpop.f32.mrb[0].mxu0
  %v165 = vadd.f32 0.0, %v164
  %v166 = vpop.f32.mrb[0].mxu0
  %167 = vmatprep.mubr.f32.mxu0 0.0
  %168 = vmatmul.mubr.f32.gmra.mrb[0].mxu0 %v46
  %v169 = vpop.f32.mrb[0].mxu0
  %v170 = vadd.f32 0.0, %v169
  %v171 = vpop.f32.mrb[0].mxu0
  %172 = vmatprep.mubr.f32.mxu0 0.0
  %173 = vmatmul.mubr.f32.gmra.mrb[0].mxu0 %v49
  %v174 = vpop.f32.mrb[0].mxu0
  %v175 = vadd.f32 0.0, %v174
  %v176 = vpop.f32.mrb[0].mxu0
  %177 = vmatprep.mubr.f32.mxu0 0.0
  %178 = vmatmul.mubr.f32.gmra.mrb[0].mxu0 %v52
  %v179 = vpop.f32.mrb[0].mxu0
  %v180 = vadd.f32 0.0, %v179
  %v181 = vpop.f32.mrb[0].mxu0
  %182 = vmatprep.mubr.f32.mxu0 0.0
  %183 = vmatmul.mubr.f32.gmra.mrb[0].mxu0 %v55
  %v184 = vpop.f32.mrb[0].mxu0
  %v185 = vadd.f32 0.0, %v184
  %v186 = vpop.f32.mrb[0].mxu0
  %187 = vmatprep.mubr.f32.mxu0 0.0
  %188 = vmatmul.mubr.f32.gmra.mrb[0].mxu0 %v58
  %v189 = vpop.f32.mrb[0].mxu0
  %v190 = vadd.f32 0.0, %v189
  %v191 = vpop.f32.mrb[0].mxu0
  %192 = vmatprep.mubr.f32.mxu0 0.0
  %193 = vmatmul.mubr.f32.gmra.mrb[0].mxu0 %v61
  %v194 = vpop.f32.mrb[0].mxu0
  %v195 = vadd.f32 0.0, %v194
  %v196 = vpop.f32.mrb[0].mxu0
  %197 = vmatprep.mubr.f32.mxu0 0.0
  %198 = vmatmul.mubr.f32.gmra.mrb[0].mxu0 %v64
  %v199 = vpop.f32.mrb[0].mxu0
  %v200 = vadd.f32 0.0, %v199
  %v201 = vpop.f32.mrb[0].mxu0
  %202 = vmatprep.mubr.f32.mxu0 0.0
  %203 = vmatmul.mubr.f32.gmra.mrb[0].mxu0 %v67
  %v204 = vpop.f32.mrb[0].mxu0
  %v205 = vadd.f32 0.0, %v204
  %v206 = vpop.f32.mrb[0].mxu0
  %207 = vmatprep.mubr.f32.mxu0 0.0
  %208 = vmatmul.mubr.f32.gmra.mrb[0].mxu0 %v70
  %v209 = vpop.f32.mrb[0].mxu0
  %v210 = vadd.f32 0.0, %v209
  %v211 = vpop.f32.mrb[0].mxu0
  %212 = vmatprep.mubr.f32.mxu0 0.0
  %213 = vmatmul.mubr.f32.gmra.mrb[0].mxu0 %v73
  %v214 = vpop.f32.mrb[0].mxu0
  %v215 = vadd.f32 0.0, %v214
  %v216 = vpop.f32.mrb[0].mxu0
  %217 = vmatprep.mubr.f32.mxu0 0.0
  %218 = vmatmul.mubr.f32.gmra.mrb[0].mxu0 %v76
  %v219 = vpop.f32.mrb[0].mxu0
  %v220 = vadd.f32 0.0, %v219
  %v221 = vpop.f32.mrb[0].mxu0
  %222 = vdwg.mxu0
  %223 = vst [vmem:[%s2] sm:$0xff] %v145
  %224 = vst [vmem:[%s2 + $0x8] sm:$0xff] %v150
  %225 = vst [vmem:[%s2 + $0x10] sm:$0xff] %v155
  %226 = vst [vmem:[%s2 + $0x18] sm:$0xff] %v160
  %227 = vst [vmem:[%s2 + $0x20] sm:$0xff] %v165
  %228 = vst [vmem:[%s2 + $0x28] sm:$0xff] %v170
  %229 = vst [vmem:[%s2 + $0x30] sm:$0xff] %v175
  %230 = vst [vmem:[%s2 + $0x38] sm:$0xff] %v180
  %231 = vst [vmem:[%s2 + $0x40] sm:$0xff] %v185
  %232 = vst [vmem:[%s2 + $0x48] sm:$0xff] %v190
  %233 = vst [vmem:[%s2 + $0x50] sm:$0xff] %v195
  %234 = vst [vmem:[%s2 + $0x58] sm:$0xff] %v200
  %235 = vst [vmem:[%s2 + $0x60] sm:$0xff] %v205
  %236 = vst [vmem:[%s2 + $0x68] sm:$0xff] %v210
  %237 = vst [vmem:[%s2 + $0x70] sm:$0xff] %v215
  %238 = vst [vmem:[%s2 + $0x78] sm:$0xff] %v220
  // Predicated region
  $region10: #{qconv_forward.2} parent=0 // pred_check
    _
  $region11: #{qconv_forward.2} parent=0 // pred_check_branch
    %240 = sbr.rel (0) target = $region13
  $region12: #{qconv_forward.2} parent=0 // pred_region
    _
  $region13: #{qconv_forward.2} parent=0 // pred_fallthru
    _
  // Predicated region
  $region14: #{qconv_forward.2} parent=0 // pred_check
    _
  $region15: #{qconv_forward.2} parent=0 // pred_check_branch
    %242 = sbr.rel (0) target = $region17
  $region16: #{qconv_forward.2} parent=0 // pred_region
    _
  $region17: #{qconv_forward.2} parent=0 // pred_fallthru
    _

// kernel: qconv_forward.3
$region0: #{qconv_forward.3}
  #allocation0 [shape = 'u32[]', space=smem, size = 0x4, offset = 0x4, fixed_abs, tag = 'smem constant byte address 0x4 - core index']
  #allocation1 [shape = 'u32[144,128]{1,0:T(1,128)}', space=vmem, size = 0x12000, scoped, tag = 'internal scratch']
  %s0 = inlined_call_operand.vmem [shape: f32[128,512], index: 0, kind: input, shape index: {}]
  %s1 = inlined_call_operand.vmem [shape: f32[128,16], index: 1, kind: input, shape index: {}]
  %s2 = inlined_call_operand.vmem [shape: f32[16,128], index: 2, kind: input, shape index: {}]
  %s3 = inlined_call_operand.vmem [shape: f32[128,128], index: 3, kind: input, shape index: {}]
  %s4 = inlined_call_operand.vmem [shape: f32[1,128], index: 4, kind: input, shape index: {}]
  %s5 = inlined_call_operand.vmem [shape: f32[128,128], index: 5, kind: output, shape index: {}]
  %s6 = sld [smem:[#allocation0]]
  $region30: #{qconv_forward.3} parent=0
    _
  %s8 = ssub.s32 1, %s6
  %s9 = scalar_select 0, %s8, %s6
  // Predicated region
  $region2: #{qconv_forward.3} parent=0 // pred_check
    _
  $region3: #{qconv_forward.3} parent=0 // pred_check_branch
    %11 = sbr.rel (0) target = $region5
  $region4: #{qconv_forward.3} parent=0 // pred_region
    _
  $region5: #{qconv_forward.3} parent=0 // pred_fallthru
    _
  // Predicated region
  $region6: #{qconv_forward.3} parent=0 // pred_check
    _
  $region7: #{qconv_forward.3} parent=0 // pred_check_branch
    %13 = sbr.rel (0) target = $region9
  $region8: #{qconv_forward.3} parent=0 // pred_region
    _
  $region9: #{qconv_forward.3} parent=0 // pred_fallthru
    _
  // Predicated region
  $region10: #{qconv_forward.3} parent=0 // pred_check
    _
  $region11: #{qconv_forward.3} parent=0 // pred_check_branch
    %15 = sbr.rel (0) target = $region13
  $region12: #{qconv_forward.3} parent=0 // pred_region
    _
  $region13: #{qconv_forward.3} parent=0 // pred_fallthru
    _
  // Predicated region
  $region14: #{qconv_forward.3} parent=0 // pred_check
    _
  $region15: #{qconv_forward.3} parent=0 // pred_check_branch
    %17 = sbr.rel (0) target = $region17
  $region16: #{qconv_forward.3} parent=0 // pred_region
    _
  $region17: #{qconv_forward.3} parent=0 // pred_fallthru
    _
  // Predicated region
  $region18: #{qconv_forward.3} parent=0 // pred_check
    _
  $region19: #{qconv_forward.3} parent=0 // pred_check_branch
    %19 = sbr.rel (0) target = $region21
  $region20: #{qconv_forward.3} parent=0 // pred_region
    _
  $region21: #{qconv_forward.3} parent=0 // pred_fallthru
    _
  %v20 = vld [vmem:[%s0] sm:$0xff]
  %v21 = vld [vmem:[%s0 + $0x20] sm:$0xff]
  %v22 = vld [vmem:[%s0 + $0x40] sm:$0xff]
  %v23 = vld [vmem:[%s0 + $0x60] sm:$0xff]
  %v24 = vld [vmem:[%s0 + $0x80] sm:$0xff]
  %v25 = vld [vmem:[%s0 + $0xa0] sm:$0xff]
  %v26 = vld [vmem:[%s0 + $0xc0] sm:$0xff]
  %v27 = vld [vmem:[%s0 + $0xe0] sm:$0xff]
  %v28 = vld [vmem:[%s0 + $0x100] sm:$0xff]
  %v29 = vld [vmem:[%s0 + $0x120] sm:$0xff]
  %v30 = vld [vmem:[%s0 + $0x140] sm:$0xff]
  %v31 = vld [vmem:[%s0 + $0x160] sm:$0xff]
  %v32 = vld [vmem:[%s0 + $0x180] sm:$0xff]
  %v33 = vld [vmem:[%s0 + $0x1a0] sm:$0xff]
  %v34 = vld [vmem:[%s0 + $0x1c0] sm:$0xff]
  %v35 = vld [vmem:[%s0 + $0x1e0] sm:$0xff]
  %vm36 = vcmp.gt.f32.partialorder %v20, 0.0
  %vm37 = vcmp.gt.f32.partialorder %v21, 0.0
  %vm38 = vcmp.gt.f32.partialorder %v22, 0.0
  %vm39 = vcmp.gt.f32.partialorder %v23, 0.0
  %vm40 = vcmp.gt.f32.partialorder %v24, 0.0
  %vm41 = vcmp.gt.f32.partialorder %v25, 0.0
  %vm42 = vcmp.gt.f32.partialorder %v26, 0.0
  %vm43 = vcmp.gt.f32.partialorder %v27, 0.0
  %vm44 = vcmp.gt.f32.partialorder %v28, 0.0
  %vm45 = vcmp.gt.f32.partialorder %v29, 0.0
  %vm46 = vcmp.gt.f32.partialorder %v30, 0.0
  %vm47 = vcmp.gt.f32.partialorder %v31, 0.0
  %vm48 = vcmp.gt.f32.partialorder %v32, 0.0
  %vm49 = vcmp.gt.f32.partialorder %v33, 0.0
  %vm50 = vcmp.gt.f32.partialorder %v34, 0.0
  %vm51 = vcmp.gt.f32.partialorder %v35, 0.0
  %v52 = vmul.f32 %v20, 0.01
  %v53 = vmul.f32 %v21, 0.01
  %v54 = vmul.f32 %v22, 0.01
  %v55 = vmul.f32 %v23, 0.01
  %v56 = vmul.f32 %v24, 0.01
  %v57 = vmul.f32 %v25, 0.01
  %v58 = vmul.f32 %v26, 0.01
  %v59 = vmul.f32 %v27, 0.01
  %v60 = vmul.f32 %v28, 0.01
  %v61 = vmul.f32 %v29, 0.01
  %v62 = vmul.f32 %v30, 0.01
  %v63 = vmul.f32 %v31, 0.01
  %v64 = vmul.f32 %v32, 0.01
  %v65 = vmul.f32 %v33, 0.01
  %v66 = vmul.f32 %v34, 0.01
  %v67 = vmul.f32 %v35, 0.01
  %v68 = vsel %vm36, %v20, %v52
  %v69 = vsel %vm37, %v21, %v53
  %v70 = vsel %vm38, %v22, %v54
  %v71 = vsel %vm39, %v23, %v55
  %v72 = vsel %vm40, %v24, %v56
  %v73 = vsel %vm41, %v25, %v57
  %v74 = vsel %vm42, %v26, %v58
  %v75 = vsel %vm43, %v27, %v59
  %v76 = vsel %vm44, %v28, %v60
  %v77 = vsel %vm45, %v29, %v61
  %v78 = vsel %vm46, %v30, %v62
  %v79 = vsel %vm47, %v31, %v63
  %v80 = vsel %vm48, %v32, %v64
  %v81 = vsel %vm49, %v33, %v65
  %v82 = vsel %vm50, %v34, %v66
  %v83 = vsel %vm51, %v35, %v67
  %v84 = vadd.f32 %v68, 0.0
  %v85 = vadd.f32 %v69, 0.0
  %v86 = vadd.f32 %v70, 0.0
  %v87 = vadd.f32 %v71, 0.0
  %v88 = vadd.f32 %v72, 0.0
  %v89 = vadd.f32 %v73, 0.0
  %v90 = vadd.f32 %v74, 0.0
  %v91 = vadd.f32 %v75, 0.0
  %v92 = vadd.f32 %v76, 0.0
  %v93 = vadd.f32 %v77, 0.0
  %v94 = vadd.f32 %v78, 0.0
  %v95 = vadd.f32 %v79, 0.0
  %v96 = vadd.f32 %v80, 0.0
  %v97 = vadd.f32 %v81, 0.0
  %v98 = vadd.f32 %v82, 0.0
  %v99 = vadd.f32 %v83, 0.0
  %v100 = vld [vmem:[%s0 + $0x8] sm:$0xff]
  %v101 = vld [vmem:[%s0 + $0x28] sm:$0xff]
  %v102 = vld [vmem:[%s0 + $0x48] sm:$0xff]
  %v103 = vld [vmem:[%s0 + $0x68] sm:$0xff]
  %v104 = vld [vmem:[%s0 + $0x88] sm:$0xff]
  %v105 = vld [vmem:[%s0 + $0xa8] sm:$0xff]
  %v106 = vld [vmem:[%s0 + $0xc8] sm:$0xff]
  %v107 = vld [vmem:[%s0 + $0xe8] sm:$0xff]
  %v108 = vld [vmem:[%s0 + $0x108] sm:$0xff]
  %v109 = vld [vmem:[%s0 + $0x128] sm:$0xff]
  %v110 = vld [vmem:[%s0 + $0x148] sm:$0xff]
  %v111 = vld [vmem:[%s0 + $0x168] sm:$0xff]
  %v112 = vld [vmem:[%s0 + $0x188] sm:$0xff]
  %v113 = vld [vmem:[%s0 + $0x1a8] sm:$0xff]
  %v114 = vld [vmem:[%s0 + $0x1c8] sm:$0xff]
  %v115 = vld [vmem:[%s0 + $0x1e8] sm:$0xff]
  %vm116 = vcmp.gt.f32.partialorder %v100, 0.0
  %vm117 = vcmp.gt.f32.partialorder %v101, 0.0
  %vm118 = vcmp.gt.f32.partialorder %v102, 0.0
  %vm119 = vcmp.gt.f32.partialorder %v103, 0.0
  %vm120 = vcmp.gt.f32.partialorder %v104, 0.0
  %vm121 = vcmp.gt.f32.partialorder %v105, 0.0
  %vm122 = vcmp.gt.f32.partialorder %v106, 0.0
  %vm123 = vcmp.gt.f32.partialorder %v107, 0.0
  %vm124 = vcmp.gt.f32.partialorder %v108, 0.0
  %vm125 = vcmp.gt.f32.partialorder %v109, 0.0
  %vm126 = vcmp.gt.f32.partialorder %v110, 0.0
  %vm127 = vcmp.gt.f32.partialorder %v111, 0.0
  %vm128 = vcmp.gt.f32.partialorder %v112, 0.0
  %vm129 = vcmp.gt.f32.partialorder %v113, 0.0
  %vm130 = vcmp.gt.f32.partialorder %v114, 0.0
  %vm131 = vcmp.gt.f32.partialorder %v115, 0.0
  %v132 = vmul.f32 %v100, 0.01
  %v133 = vmul.f32 %v101, 0.01
  %v134 = vmul.f32 %v102, 0.01
  %v135 = vmul.f32 %v103, 0.01
  %v136 = vmul.f32 %v104, 0.01
  %v137 = vmul.f32 %v105, 0.01
  %v138 = vmul.f32 %v106, 0.01
  %v139 = vmul.f32 %v107, 0.01
  %v140 = vmul.f32 %v108, 0.01
  %v141 = vmul.f32 %v109, 0.01
  %v142 = vmul.f32 %v110, 0.01
  %v143 = vmul.f32 %v111, 0.01
  %v144 = vmul.f32 %v112, 0.01
  %v145 = vmul.f32 %v113, 0.01
  %v146 = vmul.f32 %v114, 0.01
  %v147 = vmul.f32 %v115, 0.01
  %v148 = vsel %vm116, %v100, %v132
  %v149 = vsel %vm117, %v101, %v133
  %v150 = vsel %vm118, %v102, %v134
  %v151 = vsel %vm119, %v103, %v135
  %v152 = vsel %vm120, %v104, %v136
  %v153 = vsel %vm121, %v105, %v137
  %v154 = vsel %vm122, %v106, %v138
  %v155 = vsel %vm123, %v107, %v139
  %v156 = vsel %vm124, %v108, %v140
  %v157 = vsel %vm125, %v109, %v141
  %v158 = vsel %vm126, %v110, %v142
  %v159 = vsel %vm127, %v111, %v143
  %v160 = vsel %vm128, %v112, %v144
  %v161 = vsel %vm129, %v113, %v145
  %v162 = vsel %vm130, %v114, %v146
  %v163 = vsel %vm131, %v115, %v147
  %v164 = vadd.f32 %v84, %v148
  %v165 = vadd.f32 %v85, %v149
  %v166 = vadd.f32 %v86, %v150
  %v167 = vadd.f32 %v87, %v151
  %v168 = vadd.f32 %v88, %v152
  %v169 = vadd.f32 %v89, %v153
  %v170 = vadd.f32 %v90, %v154
  %v171 = vadd.f32 %v91, %v155
  %v172 = vadd.f32 %v92, %v156
  %v173 = vadd.f32 %v93, %v157
  %v174 = vadd.f32 %v94, %v158
  %v175 = vadd.f32 %v95, %v159
  %v176 = vadd.f32 %v96, %v160
  %v177 = vadd.f32 %v97, %v161
  %v178 = vadd.f32 %v98, %v162
  %v179 = vadd.f32 %v99, %v163
  %v180 = vld [vmem:[%s0 + $0x10] sm:$0xff]
  %v181 = vld [vmem:[%s0 + $0x30] sm:$0xff]
  %v182 = vld [vmem:[%s0 + $0x50] sm:$0xff]
  %v183 = vld [vmem:[%s0 + $0x70] sm:$0xff]
  %v184 = vld [vmem:[%s0 + $0x90] sm:$0xff]
  %v185 = vld [vmem:[%s0 + $0xb0] sm:$0xff]
  %v186 = vld [vmem:[%s0 + $0xd0] sm:$0xff]
  %v187 = vld [vmem:[%s0 + $0xf0] sm:$0xff]
  %v188 = vld [vmem:[%s0 + $0x110] sm:$0xff]
  %v189 = vld [vmem:[%s0 + $0x130] sm:$0xff]
  %v190 = vld [vmem:[%s0 + $0x150] sm:$0xff]
  %v191 = vld [vmem:[%s0 + $0x170] sm:$0xff]
  %v192 = vld [vmem:[%s0 + $0x190] sm:$0xff]
  %v193 = vld [vmem:[%s0 + $0x1b0] sm:$0xff]
  %v194 = vld [vmem:[%s0 + $0x1d0] sm:$0xff]
  %v195 = vld [vmem:[%s0 + $0x1f0] sm:$0xff]
  %vm196 = vcmp.gt.f32.partialorder %v180, 0.0
  %vm197 = vcmp.gt.f32.partialorder %v181, 0.0
  %vm198 = vcmp.gt.f32.partialorder %v182, 0.0
  %vm199 = vcmp.gt.f32.partialorder %v183, 0.0
  %vm200 = vcmp.gt.f32.partialorder %v184, 0.0
  %vm201 = vcmp.gt.f32.partialorder %v185, 0.0
  %vm202 = vcmp.gt.f32.partialorder %v186, 0.0
  %vm203 = vcmp.gt.f32.partialorder %v187, 0.0
  %vm204 = vcmp.gt.f32.partialorder %v188, 0.0
  %vm205 = vcmp.gt.f32.partialorder %v189, 0.0
  %vm206 = vcmp.gt.f32.partialorder %v190, 0.0
  %vm207 = vcmp.gt.f32.partialorder %v191, 0.0
  %vm208 = vcmp.gt.f32.partialorder %v192, 0.0
  %vm209 = vcmp.gt.f32.partialorder %v193, 0.0
  %vm210 = vcmp.gt.f32.partialorder %v194, 0.0
  %vm211 = vcmp.gt.f32.partialorder %v195, 0.0
  %v212 = vmul.f32 %v180, 0.01
  %v213 = vmul.f32 %v181, 0.01
  %v214 = vmul.f32 %v182, 0.01
  %v215 = vmul.f32 %v183, 0.01
  %v216 = vmul.f32 %v184, 0.01
  %v217 = vmul.f32 %v185, 0.01
  %v218 = vmul.f32 %v186, 0.01
  %v219 = vmul.f32 %v187, 0.01
  %v220 = vmul.f32 %v188, 0.01
  %v221 = vmul.f32 %v189, 0.01
  %v222 = vmul.f32 %v190, 0.01
  %v223 = vmul.f32 %v191, 0.01
  %v224 = vmul.f32 %v192, 0.01
  %v225 = vmul.f32 %v193, 0.01
  %v226 = vmul.f32 %v194, 0.01
  %v227 = vmul.f32 %v195, 0.01
  %v228 = vsel %vm196, %v180, %v212
  %v229 = vsel %vm197, %v181, %v213
  %v230 = vsel %vm198, %v182, %v214
  %v231 = vsel %vm199, %v183, %v215
  %v232 = vsel %vm200, %v184, %v216
  %v233 = vsel %vm201, %v185, %v217
  %v234 = vsel %vm202, %v186, %v218
  %v235 = vsel %vm203, %v187, %v219
  %v236 = vsel %vm204, %v188, %v220
  %v237 = vsel %vm205, %v189, %v221
  %v238 = vsel %vm206, %v190, %v222
  %v239 = vsel %vm207, %v191, %v223
  %v240 = vsel %vm208, %v192, %v224
  %v241 = vsel %vm209, %v193, %v225
  %v242 = vsel %vm210, %v194, %v226
  %v243 = vsel %vm211, %v195, %v227
  %v244 = vadd.f32 %v164, %v228
  %v245 = vadd.f32 %v165, %v229
  %v246 = vadd.f32 %v166, %v230
  %v247 = vadd.f32 %v167, %v231
  %v248 = vadd.f32 %v168, %v232
  %v249 = vadd.f32 %v169, %v233
  %v250 = vadd.f32 %v170, %v234
  %v251 = vadd.f32 %v171, %v235
  %v252 = vadd.f32 %v172, %v236
  %v253 = vadd.f32 %v173, %v237
  %v254 = vadd.f32 %v174, %v238
  %v255 = vadd.f32 %v175, %v239
  %v256 = vadd.f32 %v176, %v240
  %v257 = vadd.f32 %v177, %v241
  %v258 = vadd.f32 %v178, %v242
  %v259 = vadd.f32 %v179, %v243
  %v260 = vld [vmem:[%s0 + $0x18] sm:$0xff]
  %v261 = vld [vmem:[%s0 + $0x38] sm:$0xff]
  %v262 = vld [vmem:[%s0 + $0x58] sm:$0xff]
  %v263 = vld [vmem:[%s0 + $0x78] sm:$0xff]
  %v264 = vld [vmem:[%s0 + $0x98] sm:$0xff]
  %v265 = vld [vmem:[%s0 + $0xb8] sm:$0xff]
  %v266 = vld [vmem:[%s0 + $0xd8] sm:$0xff]
  %v267 = vld [vmem:[%s0 + $0xf8] sm:$0xff]
  %v268 = vld [vmem:[%s0 + $0x118] sm:$0xff]
  %v269 = vld [vmem:[%s0 + $0x138] sm:$0xff]
  %v270 = vld [vmem:[%s0 + $0x158] sm:$0xff]
  %v271 = vld [vmem:[%s0 + $0x178] sm:$0xff]
  %v272 = vld [vmem:[%s0 + $0x198] sm:$0xff]
  %v273 = vld [vmem:[%s0 + $0x1b8] sm:$0xff]
  %v274 = vld [vmem:[%s0 + $0x1d8] sm:$0xff]
  %v275 = vld [vmem:[%s0 + $0x1f8] sm:$0xff]
  %vm276 = vcmp.gt.f32.partialorder %v260, 0.0
  %vm277 = vcmp.gt.f32.partialorder %v261, 0.0
  %vm278 = vcmp.gt.f32.partialorder %v262, 0.0
  %vm279 = vcmp.gt.f32.partialorder %v263, 0.0
  %vm280 = vcmp.gt.f32.partialorder %v264, 0.0
  %vm281 = vcmp.gt.f32.partialorder %v265, 0.0
  %vm282 = vcmp.gt.f32.partialorder %v266, 0.0
  %vm283 = vcmp.gt.f32.partialorder %v267, 0.0
  %vm284 = vcmp.gt.f32.partialorder %v268, 0.0
  %vm285 = vcmp.gt.f32.partialorder %v269, 0.0
  %vm286 = vcmp.gt.f32.partialorder %v270, 0.0
  %vm287 = vcmp.gt.f32.partialorder %v271, 0.0
  %vm288 = vcmp.gt.f32.partialorder %v272, 0.0
  %vm289 = vcmp.gt.f32.partialorder %v273, 0.0
  %vm290 = vcmp.gt.f32.partialorder %v274, 0.0
  %vm291 = vcmp.gt.f32.partialorder %v275, 0.0
  %v292 = vmul.f32 %v260, 0.01
  %v293 = vmul.f32 %v261, 0.01
  %v294 = vmul.f32 %v262, 0.01
  %v295 = vmul.f32 %v263, 0.01
  %v296 = vmul.f32 %v264, 0.01
  %v297 = vmul.f32 %v265, 0.01
  %v298 = vmul.f32 %v266, 0.01
  %v299 = vmul.f32 %v267, 0.01
  %v300 = vmul.f32 %v268, 0.01
  %v301 = vmul.f32 %v269, 0.01
  %v302 = vmul.f32 %v270, 0.01
  %v303 = vmul.f32 %v271, 0.01
  %v304 = vmul.f32 %v272, 0.01
  %v305 = vmul.f32 %v273, 0.01
  %v306 = vmul.f32 %v274, 0.01
  %v307 = vmul.f32 %v275, 0.01
  %v308 = vsel %vm276, %v260, %v292
  %v309 = vsel %vm277, %v261, %v293
  %v310 = vsel %vm278, %v262, %v294
  %v311 = vsel %vm279, %v263, %v295
  %v312 = vsel %vm280, %v264, %v296
  %v313 = vsel %vm281, %v265, %v297
  %v314 = vsel %vm282, %v266, %v298
  %v315 = vsel %vm283, %v267, %v299
  %v316 = vsel %vm284, %v268, %v300
  %v317 = vsel %vm285, %v269, %v301
  %v318 = vsel %vm286, %v270, %v302
  %v319 = vsel %vm287, %v271, %v303
  %v320 = vsel %vm288, %v272, %v304
  %v321 = vsel %vm289, %v273, %v305
  %v322 = vsel %vm290, %v274, %v306
  %v323 = vsel %vm291, %v275, %v307
  %v324 = vadd.f32 %v244, %v308
  %v325 = vadd.f32 %v245, %v309
  %v326 = vadd.f32 %v246, %v310
  %v327 = vadd.f32 %v247, %v311
  %v328 = vadd.f32 %v248, %v312
  %v329 = vadd.f32 %v249, %v313
  %v330 = vadd.f32 %v250, %v314
  %v331 = vadd.f32 %v251, %v315
  %v332 = vadd.f32 %v252, %v316
  %v333 = vadd.f32 %v253, %v317
  %v334 = vadd.f32 %v254, %v318
  %v335 = vadd.f32 %v255, %v319
  %v336 = vadd.f32 %v256, %v320
  %v337 = vadd.f32 %v257, %v321
  %v338 = vadd.f32 %v258, %v322
  %v339 = vadd.f32 %v259, %v323
  %v340 = vmul.f32 %v324, 0.25
  %v341 = vmul.f32 %v325, 0.25
  %v342 = vmul.f32 %v326, 0.25
  %v343 = vmul.f32 %v327, 0.25
  %v344 = vmul.f32 %v328, 0.25
  %v345 = vmul.f32 %v329, 0.25
  %v346 = vmul.f32 %v330, 0.25
  %v347 = vmul.f32 %v331, 0.25
  %v348 = vmul.f32 %v332, 0.25
  %v349 = vmul.f32 %v333, 0.25
  %v350 = vmul.f32 %v334, 0.25
  %v351 = vmul.f32 %v335, 0.25
  %v352 = vmul.f32 %v336, 0.25
  %v353 = vmul.f32 %v337, 0.25
  %v354 = vmul.f32 %v338, 0.25
  %v355 = vmul.f32 %v339, 0.25
  %v356 = vld [vmem:[%s1] sm:$0xff]
  %v357 = vld [vmem:[%s1 + $0x8] sm:$0xff]
  %v358 = vld [vmem:[%s1 + $0x10] sm:$0xff]
  %v359 = vld [vmem:[%s1 + $0x18] sm:$0xff]
  %v360 = vld [vmem:[%s1 + $0x20] sm:$0xff]
  %v361 = vld [vmem:[%s1 + $0x28] sm:$0xff]
  %v362 = vld [vmem:[%s1 + $0x30] sm:$0xff]
  %v363 = vld [vmem:[%s1 + $0x38] sm:$0xff]
  %v364 = vld [vmem:[%s1 + $0x40] sm:$0xff]
  %v365 = vld [vmem:[%s1 + $0x48] sm:$0xff]
  %v366 = vld [vmem:[%s1 + $0x50] sm:$0xff]
  %v367 = vld [vmem:[%s1 + $0x58] sm:$0xff]
  %v368 = vld [vmem:[%s1 + $0x60] sm:$0xff]
  %v369 = vld [vmem:[%s1 + $0x68] sm:$0xff]
  %v370 = vld [vmem:[%s1 + $0x70] sm:$0xff]
  %v371 = vld [vmem:[%s1 + $0x78] sm:$0xff]
  %v372 = vld [vmem:[%s2] sm:$0xff]
  %v373 = vld [vmem:[%s2 + $0x8] sm:$0xff]
  %v374 = vld [vmem:[%s3] sm:$0xff]
  %v375 = vld [vmem:[%s3 + $0x8] sm:$0xff]
  %v376 = vld [vmem:[%s3 + $0x10] sm:$0xff]
  %v377 = vld [vmem:[%s3 + $0x18] sm:$0xff]
  %v378 = vld [vmem:[%s3 + $0x20] sm:$0xff]
  %v379 = vld [vmem:[%s3 + $0x28] sm:$0xff]
  %v380 = vld [vmem:[%s3 + $0x30] sm:$0xff]
  %v381 = vld [vmem:[%s3 + $0x38] sm:$0xff]
  %v382 = vld [vmem:[%s3 + $0x40] sm:$0xff]
  %v383 = vld [vmem:[%s3 + $0x48] sm:$0xff]
  %v384 = vld [vmem:[%s3 + $0x50] sm:$0xff]
  %v385 = vld [vmem:[%s3 + $0x58] sm:$0xff]
  %v386 = vld [vmem:[%s3 + $0x60] sm:$0xff]
  %v387 = vld [vmem:[%s3 + $0x68] sm:$0xff]
  %v388 = vld [vmem:[%s3 + $0x70] sm:$0xff]
  %v389 = vld [vmem:[%s3 + $0x78] sm:$0xff]
  %390 = vmatprep.subr.mxu0 0.0
  %391 = vmatpush1.msra.mxu0 %v374
  %392 = vmatprep.subr.mxu0 0.0
  %393 = vmatpush1.msra.mxu0 %v375
  %394 = vmatprep.subr.mxu0 0.0
  %395 = vmatpush1.msra.mxu0 %v376
  %396 = vmatprep.subr.mxu0 0.0
  %397 = vmatpush1.msra.mxu0 %v377
  %398 = vmatprep.subr.mxu0 0.0
  %399 = vmatpush1.msra.mxu0 %v378
  %400 = vmatprep.subr.mxu0 0.0
  %401 = vmatpush1.msra.mxu0 %v379
  %402 = vmatprep.subr.mxu0 0.0
  %403 = vmatpush1.msra.mxu0 %v380
  %404 = vmatprep.subr.mxu0 0.0
  %405 = vmatpush1.msra.mxu0 %v381
  %406 = vmatprep.subr.mxu0 0.0
  %407 = vmatpush1.msra.mxu0 %v382
  %408 = vmatprep.subr.mxu0 0.0
  %409 = vmatpush1.msra.mxu0 %v383
  %410 = vmatprep.subr.mxu0 0.0
  %411 = vmatpush1.msra.mxu0 %v384
  %412 = vmatprep.subr.mxu0 0.0
  %413 = vmatpush1.msra.mxu0 %v385
  %414 = vmatprep.subr.mxu0 0.0
  %415 = vmatpush1.msra.mxu0 %v386
  %416 = vmatprep.subr.mxu0 0.0
  %417 = vmatpush1.msra.mxu0 %v387
  %418 = vmatprep.subr.mxu0 0.0
  %419 = vmatpush1.msra.mxu0 %v388
  %420 = vmatprep.subr.mxu0 0.0
  %421 = vmatpush1.msra.mxu0 %v389
  %422 = vmatprep.subr.mxu0 0.0
  %423 = vmatpush1.msra.mxu0 0.0
  %424 = vmatprep.subr.mxu0 0.0
  %425 = vmatpush1.msra.mxu0 0.0
  %426 = vmatprep.subr.mxu0 0.0
  %427 = vmatpush1.msra.mxu0 0.0
  %428 = vmatprep.subr.mxu0 0.0
  %429 = vmatpush1.msra.mxu0 0.0
  %430 = vmatprep.subr.mxu0 0.0
  %431 = vmatpush1.msra.mxu0 0.0
  %432 = vmatprep.subr.mxu0 0.0
  %433 = vmatpush1.msra.mxu0 0.0
  %434 = vmatprep.subr.mxu0 0.0
  %435 = vmatpush1.msra.mxu0 0.0
  %436 = vmatprep.subr.mxu0 0.0
  %437 = vmatpush1.msra.mxu0 0.0
  %438 = vmatprep.subr.mxu0 0.0
  %439 = vmatpush1.msra.mxu0 0.0
  %440 = vmatprep.subr.mxu0 0.0
  %441 = vmatpush1.msra.mxu0 0.0
  %442 = vmatprep.subr.mxu0 0.0
  %443 = vmatpush1.msra.mxu0 0.0
  %444 = vmatprep.subr.mxu0 0.0
  %445 = vmatpush1.msra.mxu0 0.0
  %446 = vmatprep.subr.mxu0 0.0
  %447 = vmatpush1.msra.mxu0 0.0
  %448 = vmatprep.subr.mxu0 0.0
  %449 = vmatpush1.msra.mxu0 0.0
  %450 = vmatprep.subr.mxu0 0.0
  %451 = vmatpush1.msra.mxu0 0.0
  %452 = vmatprep.subr.mxu0 0.0
  %453 = vmatpush1.msra.mxu0 0.0
  %454 = vmatprep.mubr.f32.mxu0 0.0
  %455 = vmatmul.mubr.f32.gmra.mrb[0].mxu0 %v340
  %v456 = vpop.f32.mrb[0].mxu0
  %v457 = vadd.f32 0.0, %v456
  %v458 = vpop.f32.mrb[0].mxu0
  %459 = vmatprep.mubr.f32.mxu0 0.0
  %460 = vmatmul.mubr.f32.gmra.mrb[0].mxu0 %v341
  %v461 = vpop.f32.mrb[0].mxu0
  %v462 = vadd.f32 0.0, %v461
  %v463 = vpop.f32.mrb[0].mxu0
  %464 = vmatprep.mubr.f32.mxu0 0.0
  %465 = vmatmul.mubr.f32.gmra.mrb[0].mxu0 %v342
  %v466 = vpop.f32.mrb[0].mxu0
  %v467 = vadd.f32 0.0, %v466
  %v468 = vpop.f32.mrb[0].mxu0
  %469 = vmatprep.mubr.f32.mxu0 0.0
  %470 = vmatmul.mubr.f32.gmra.mrb[0].mxu0 %v343
  %v471 = vpop.f32.mrb[0].mxu0
  %v472 = vadd.f32 0.0, %v471
  %v473 = vpop.f32.mrb[0].mxu0
  %474 = vmatprep.mubr.f32.mxu0 0.0
  %475 = vmatmul.mubr.f32.gmra.mrb[0].mxu0 %v344
  %v476 = vpop.f32.mrb[0].mxu0
  %v477 = vadd.f32 0.0, %v476
  %v478 = vpop.f32.mrb[0].mxu0
  %479 = vmatprep.mubr.f32.mxu0 0.0
  %480 = vmatmul.mubr.f32.gmra.mrb[0].mxu0 %v345
  %v481 = vpop.f32.mrb[0].mxu0
  %v482 = vadd.f32 0.0, %v481
  %v483 = vpop.f32.mrb[0].mxu0
  %484 = vmatprep.mubr.f32.mxu0 0.0
  %485 = vmatmul.mubr.f32.gmra.mrb[0].mxu0 %v346
  %v486 = vpop.f32.mrb[0].mxu0
  %v487 = vadd.f32 0.0, %v486
  %v488 = vpop.f32.mrb[0].mxu0
  %489 = vmatprep.mubr.f32.mxu0 0.0
  %490 = vmatmul.mubr.f32.gmra.mrb[0].mxu0 %v347
  %v491 = vpop.f32.mrb[0].mxu0
  %v492 = vadd.f32 0.0, %v491
  %v493 = vpop.f32.mrb[0].mxu0
  %494 = vmatprep.mubr.f32.mxu0 0.0
  %495 = vmatmul.mubr.f32.gmra.mrb[0].mxu0 %v348
  %v496 = vpop.f32.mrb[0].mxu0
  %v497 = vadd.f32 0.0, %v496
  %v498 = vpop.f32.mrb[0].mxu0
  %499 = vmatprep.mubr.f32.mxu0 0.0
  %500 = vmatmul.mubr.f32.gmra.mrb[0].mxu0 %v349
  %v501 = vpop.f32.mrb[0].mxu0
  %v502 = vadd.f32 0.0, %v501
  %v503 = vpop.f32.mrb[0].mxu0
  %504 = vmatprep.mubr.f32.mxu0 0.0
  %505 = vmatmul.mubr.f32.gmra.mrb[0].mxu0 %v350
  %v506 = vpop.f32.mrb[0].mxu0
  %v507 = vadd.f32 0.0, %v506
  %v508 = vpop.f32.mrb[0].mxu0
  %509 = vmatprep.mubr.f32.mxu0 0.0
  %510 = vmatmul.mubr.f32.gmra.mrb[0].mxu0 %v351
  %v511 = vpop.f32.mrb[0].mxu0
  %v512 = vadd.f32 0.0, %v511
  %v513 = vpop.f32.mrb[0].mxu0
  %514 = vmatprep.mubr.f32.mxu0 0.0
  %515 = vmatmul.mubr.f32.gmra.mrb[0].mxu0 %v352
  %v516 = vpop.f32.mrb[0].mxu0
  %v517 = vadd.f32 0.0, %v516
  %v518 = vpop.f32.mrb[0].mxu0
  %519 = vmatprep.mubr.f32.mxu0 0.0
  %520 = vmatmul.mubr.f32.gmra.mrb[0].mxu0 %v353
  %v521 = vpop.f32.mrb[0].mxu0
  %v522 = vadd.f32 0.0, %v521
  %v523 = vpop.f32.mrb[0].mxu0
  %524 = vmatprep.mubr.f32.mxu0 0.0
  %525 = vmatmul.mubr.f32.gmra.mrb[0].mxu0 %v354
  %v526 = vpop.f32.mrb[0].mxu0
  %v527 = vadd.f32 0.0, %v526
  %v528 = vpop.f32.mrb[0].mxu0
  %529 = vmatprep.mubr.f32.mxu0 0.0
  %530 = vmatmul.mubr.f32.gmra.mrb[0].mxu0 %v355
  %v531 = vpop.f32.mrb[0].mxu0
  %v532 = vadd.f32 0.0, %v531
  %v533 = vpop.f32.mrb[0].mxu0
  %534 = vdwg.mxu0
  %vm535 = vcmask 130048
  %v537 = vsel %vm535, %v356, 0
  %v540 = vsel %vm535, %v357, 0
  %v543 = vsel %vm535, %v358, 0
  %v546 = vsel %vm535, %v359, 0
  %v549 = vsel %vm535, %v360, 0
  %v552 = vsel %vm535, %v361, 0
  %v555 = vsel %vm535, %v362, 0
  %v558 = vsel %vm535, %v363, 0
  %v561 = vsel %vm535, %v364, 0
  %v564 = vsel %vm535, %v365, 0
  %v567 = vsel %vm535, %v366, 0
  %v570 = vsel %vm535, %v367, 0
  %v573 = vsel %vm535, %v368, 0
  %v576 = vsel %vm535, %v369, 0
  %v579 = vsel %vm535, %v370, 0
  %v582 = vsel %vm535, %v371, 0
  %584 = vmatprep.subr.mxu0 0.0
  %585 = vmatpush1.msra.mxu0 %v372
  %586 = vmatprep.subr.mxu0 0.0
  %587 = vmatpush1.msra.mxu0 %v373
  %588 = vmatprep.subr.mxu0 0.0
  %589 = vmatpush1.msra.mxu0 0.0
  %590 = vmatprep.subr.mxu0 0.0
  %591 = vmatpush1.msra.mxu0 0.0
  %592 = vmatprep.subr.mxu0 0.0
  %593 = vmatpush1.msra.mxu0 0.0
  %594 = vmatprep.subr.mxu0 0.0
  %595 = vmatpush1.msra.mxu0 0.0
  %596 = vmatprep.subr.mxu0 0.0
  %597 = vmatpush1.msra.mxu0 0.0
  %598 = vmatprep.subr.mxu0 0.0
  %599 = vmatpush1.msra.mxu0 0.0
  %600 = vmatprep.subr.mxu0 0.0
  %601 = vmatpush1.msra.mxu0 0.0
  %602 = vmatprep.subr.mxu0 0.0
  %603 = vmatpush1.msra.mxu0 0.0
  %604 = vmatprep.subr.mxu0 0.0
  %605 = vmatpush1.msra.mxu0 0.0
  %606 = vmatprep.subr.mxu0 0.0
  %607 = vmatpush1.msra.mxu0 0.0
  %608 = vmatprep.subr.mxu0 0.0
  %609 = vmatpush1.msra.mxu0 0.0
  %610 = vmatprep.subr.mxu0 0.0
  %611 = vmatpush1.msra.mxu0 0.0
  %612 = vmatprep.subr.mxu0 0.0
  %613 = vmatpush1.msra.mxu0 0.0
  %614 = vmatprep.subr.mxu0 0.0
  %615 = vmatpush1.msra.mxu0 0.0
  %616 = vmatprep.subr.mxu0 0.0
  %617 = vmatpush1.msra.mxu0 0.0
  %618 = vmatprep.subr.mxu0 0.0
  %619 = vmatpush1.msra.mxu0 0.0
  %620 = vmatprep.subr.mxu0 0.0
  %621 = vmatpush1.msra.mxu0 0.0
  %622 = vmatprep.subr.mxu0 0.0
  %623 = vmatpush1.msra.mxu0 0.0
  %624 = vmatprep.subr.mxu0 0.0
  %625 = vmatpush1.msra.mxu0 0.0
  %626 = vmatprep.subr.mxu0 0.0
  %627 = vmatpush1.msra.mxu0 0.0
  %628 = vmatprep.subr.mxu0 0.0
  %629 = vmatpush1.msra.mxu0 0.0
  %630 = vmatprep.subr.mxu0 0.0
  %631 = vmatpush1.msra.mxu0 0.0
  %632 = vmatprep.subr.mxu0 0.0
  %633 = vmatpush1.msra.mxu0 0.0
  %634 = vmatprep.subr.mxu0 0.0
  %635 = vmatpush1.msra.mxu0 0.0
  %636 = vmatprep.subr.mxu0 0.0
  %637 = vmatpush1.msra.mxu0 0.0
  %638 = vmatprep.subr.mxu0 0.0
  %639 = vmatpush1.msra.mxu0 0.0
  %640 = vmatprep.subr.mxu0 0.0
  %641 = vmatpush1.msra.mxu0 0.0
  %642 = vmatprep.subr.mxu0 0.0
  %643 = vmatpush1.msra.mxu0 0.0
  %644 = vmatprep.subr.mxu0 0.0
  %645 = vmatpush1.msra.mxu0 0.0
  %646 = vmatprep.subr.mxu0 0.0
  %647 = vmatpush1.msra.mxu0 0.0
  %648 = vmatprep.mubr.f32.mxu0 0.0
  %649 = vmatmul.mubr.f32.gmra.mrb[0].mxu0 %v537
  %v650 = vpop.f32.mrb[0].mxu0
  %v651 = vadd.f32 %v457, %v650
  %v652 = vpop.f32.mrb[0].mxu0
  %653 = vmatprep.mubr.f32.mxu0 0.0
  %654 = vmatmul.mubr.f32.gmra.mrb[0].mxu0 %v540
  %v655 = vpop.f32.mrb[0].mxu0
  %v656 = vadd.f32 %v462, %v655
  %v657 = vpop.f32.mrb[0].mxu0
  %658 = vmatprep.mubr.f32.mxu0 0.0
  %659 = vmatmul.mubr.f32.gmra.mrb[0].mxu0 %v543
  %v660 = vpop.f32.mrb[0].mxu0
  %v661 = vadd.f32 %v467, %v660
  %v662 = vpop.f32.mrb[0].mxu0
  %663 = vmatprep.mubr.f32.mxu0 0.0
  %664 = vmatmul.mubr.f32.gmra.mrb[0].mxu0 %v546
  %v665 = vpop.f32.mrb[0].mxu0
  %v666 = vadd.f32 %v472, %v665
  %v667 = vpop.f32.mrb[0].mxu0
  %668 = vmatprep.mubr.f32.mxu0 0.0
  %669 = vmatmul.mubr.f32.gmra.mrb[0].mxu0 %v549
  %v670 = vpop.f32.mrb[0].mxu0
  %v671 = vadd.f32 %v477, %v670
  %v672 = vpop.f32.mrb[0].mxu0
  %673 = vmatprep.mubr.f32.mxu0 0.0
  %674 = vmatmul.mubr.f32.gmra.mrb[0].mxu0 %v552
  %v675 = vpop.f32.mrb[0].mxu0
  %v676 = vadd.f32 %v482, %v675
  %v677 = vpop.f32.mrb[0].mxu0
  %678 = vmatprep.mubr.f32.mxu0 0.0
  %679 = vmatmul.mubr.f32.gmra.mrb[0].mxu0 %v555
  %v680 = vpop.f32.mrb[0].mxu0
  %v681 = vadd.f32 %v487, %v680
  %v682 = vpop.f32.mrb[0].mxu0
  %683 = vmatprep.mubr.f32.mxu0 0.0
  %684 = vmatmul.mubr.f32.gmra.mrb[0].mxu0 %v558
  %v685 = vpop.f32.mrb[0].mxu0
  %v686 = vadd.f32 %v492, %v685
  %v687 = vpop.f32.mrb[0].mxu0
  %688 = vmatprep.mubr.f32.mxu0 0.0
  %689 = vmatmul.mubr.f32.gmra.mrb[0].mxu0 %v561
  %v690 = vpop.f32.mrb[0].mxu0
  %v691 = vadd.f32 %v497, %v690
  %v692 = vpop.f32.mrb[0].mxu0
  %693 = vmatprep.mubr.f32.mxu0 0.0
  %694 = vmatmul.mubr.f32.gmra.mrb[0].mxu0 %v564
  %v695 = vpop.f32.mrb[0].mxu0
  %v696 = vadd.f32 %v502, %v695
  %v697 = vpop.f32.mrb[0].mxu0
  %698 = vmatprep.mubr.f32.mxu0 0.0
  %699 = vmatmul.mubr.f32.gmra.mrb[0].mxu0 %v567
  %v700 = vpop.f32.mrb[0].mxu0
  %v701 = vadd.f32 %v507, %v700
  %v702 = vpop.f32.mrb[0].mxu0
  %703 = vmatprep.mubr.f32.mxu0 0.0
  %704 = vmatmul.mubr.f32.gmra.mrb[0].mxu0 %v570
  %v705 = vpop.f32.mrb[0].mxu0
  %v706 = vadd.f32 %v512, %v705
  %v707 = vpop.f32.mrb[0].mxu0
  %708 = vmatprep.mubr.f32.mxu0 0.0
  %709 = vmatmul.mubr.f32.gmra.mrb[0].mxu0 %v573
  %v710 = vpop.f32.mrb[0].mxu0
  %v711 = vadd.f32 %v517, %v710
  %v712 = vpop.f32.mrb[0].mxu0
  %713 = vmatprep.mubr.f32.mxu0 0.0
  %714 = vmatmul.mubr.f32.gmra.mrb[0].mxu0 %v576
  %v715 = vpop.f32.mrb[0].mxu0
  %v716 = vadd.f32 %v522, %v715
  %v717 = vpop.f32.mrb[0].mxu0
  %718 = vmatprep.mubr.f32.mxu0 0.0
  %719 = vmatmul.mubr.f32.gmra.mrb[0].mxu0 %v579
  %v720 = vpop.f32.mrb[0].mxu0
  %v721 = vadd.f32 %v527, %v720
  %v722 = vpop.f32.mrb[0].mxu0
  %723 = vmatprep.mubr.f32.mxu0 0.0
  %724 = vmatmul.mubr.f32.gmra.mrb[0].mxu0 %v582
  %v725 = vpop.f32.mrb[0].mxu0
  %v726 = vadd.f32 %v532, %v725
  %v727 = vpop.f32.mrb[0].mxu0
  %728 = vdwg.mxu0
  %v729 = vld [vmem:[%s4] sm:$0x1]
  %v731 = vlaneseq
  %v732 = vshrl.u32 %v731, 7
  %v733 = vsub.s32 0, %v732
  %v734 = vrot.slane %v729, %v733
  %v736 = vadd.f32 %v651, %v734
  %v737 = vadd.f32 %v656, %v734
  %v738 = vadd.f32 %v661, %v734
  %v739 = vadd.f32 %v666, %v734
  %v740 = vadd.f32 %v671, %v734
  %v741 = vadd.f32 %v676, %v734
  %v742 = vadd.f32 %v681, %v734
  %v743 = vadd.f32 %v686, %v734
  %v744 = vadd.f32 %v691, %v734
  %v745 = vadd.f32 %v696, %v734
  %v746 = vadd.f32 %v701, %v734
  %v747 = vadd.f32 %v706, %v734
  %v748 = vadd.f32 %v711, %v734
  %v749 = vadd.f32 %v716, %v734
  %v750 = vadd.f32 %v721, %v734
  %v751 = vadd.f32 %v726, %v734
  %v752 = vmax.f32 %v736, 0.0
  %v753 = vmax.f32 %v737, 0.0
  %v754 = vmax.f32 %v738, 0.0
  %v755 = vmax.f32 %v739, 0.0
  %v756 = vmax.f32 %v740, 0.0
  %v757 = vmax.f32 %v741, 0.0
  %v758 = vmax.f32 %v742, 0.0
  %v759 = vmax.f32 %v743, 0.0
  %v760 = vmax.f32 %v744, 0.0
  %v761 = vmax.f32 %v745, 0.0
  %v762 = vmax.f32 %v746, 0.0
  %v763 = vmax.f32 %v747, 0.0
  %v764 = vmax.f32 %v748, 0.0
  %v765 = vmax.f32 %v749, 0.0
  %v766 = vmax.f32 %v750, 0.0
  %v767 = vmax.f32 %v751, 0.0
  %768 = vst [vmem:[%s5] sm:$0xff] %v752
  %769 = vst [vmem:[%s5 + $0x8] sm:$0xff] %v753
  %770 = vst [vmem:[%s5 + $0x10] sm:$0xff] %v754
  %771 = vst [vmem:[%s5 + $0x18] sm:$0xff] %v755
  %772 = vst [vmem:[%s5 + $0x20] sm:$0xff] %v756
  %773 = vst [vmem:[%s5 + $0x28] sm:$0xff] %v757
  %774 = vst [vmem:[%s5 + $0x30] sm:$0xff] %v758
  %775 = vst [vmem:[%s5 + $0x38] sm:$0xff] %v759
  %776 = vst [vmem:[%s5 + $0x40] sm:$0xff] %v760
  %777 = vst [vmem:[%s5 + $0x48] sm:$0xff] %v761
  %778 = vst [vmem:[%s5 + $0x50] sm:$0xff] %v762
  %779 = vst [vmem:[%s5 + $0x58] sm:$0xff] %v763
  %780 = vst [vmem:[%s5 + $0x60] sm:$0xff] %v764
  %781 = vst [vmem:[%s5 + $0x68] sm:$0xff] %v765
  %782 = vst [vmem:[%s5 + $0x70] sm:$0xff] %v766
  %783 = vst [vmem:[%s5 + $0x78] sm:$0xff] %v767
  // Predicated region
  $region22: #{qconv_forward.3} parent=0 // pred_check
    _
  $region23: #{qconv_forward.3} parent=0 // pred_check_branch
    %785 = sbr.rel (0) target = $region25
  $region24: #{qconv_forward.3} parent=0 // pred_region
    _
  $region25: #{qconv_forward.3} parent=0 // pred_fallthru
    _
  // Predicated region
  $region26: #{qconv_forward.3} parent=0 // pred_check
    _
  $region27: #{qconv_forward.3} parent=0 // pred_check_branch
    %787 = sbr.rel (0) target = $region29
  $region28: #{qconv_forward.3} parent=0 // pred_region
    _
  $region29: #{qconv_forward.3} parent=0 // pred_fallthru
    _

</llo_original>
